<compile_context>
chip_gen: v6e
topology: v6e:2x2x1
jax: 0.10.0
libtpu: 0.0.40
codegen_flags: <defaults>
</compile_context>

<pallas_src>
import jax
import jax.numpy as jnp
from jax.experimental import pallas as pl
from jax.experimental.pallas import tpu as pltpu

OUT_REAL = 784          # 28*28
OUT_PAD = 896           # 7*128, lane-dense output slab
HIDDEN = 256


def generator_kernel(x_ref, w1_ref, b1_ref, w2_ref, b2_ref, w3_ref, b3_ref, o_ref):
    wdt = w1_ref.dtype  # bf16 weights -> native MXU path; f32 accumulation throughout.

    # Layer 1: Linear(latent -> 256) + ReLU
    h1 = jnp.dot(x_ref[...].astype(wdt), w1_ref[...],
                 preferred_element_type=jnp.float32)
    h1 = jnp.maximum(h1 + b1_ref[...], 0.0)

    # Layer 2: Linear(256 -> 256) + ReLU
    h2 = jnp.dot(h1.astype(wdt), w2_ref[...],
                 preferred_element_type=jnp.float32)
    h2 = jnp.maximum(h2 + b2_ref[...], 0.0)

    # Layer 3: Linear(256 -> 896 padded) + Tanh
    h3 = jnp.dot(h2.astype(wdt), w3_ref[...],
                 preferred_element_type=jnp.float32)
    o_ref[...] = jnp.tanh(h3 + b3_ref[...]).astype(o_ref.dtype)


def generator_forward(x, params, *, block_b=512):
    """x: (B, latent) f32 -> (B, 1, 28, 28) f32."""
    w1, b1, w2, b2, w3, b3 = params  # w3/b3 already padded to OUT_PAD
    B, L = x.shape
    TB = min(block_b, B)             # batch tile (== B for small B, else 512)
    grid = (pl.cdiv(B, TB),)

    weight_bytes = sum(int(a.size) * a.dtype.itemsize for a in params)
    cost = pl.CostEstimate(
        flops=2 * B * (L * HIDDEN + HIDDEN * HIDDEN + HIDDEN * OUT_PAD),
        transcendentals=B * OUT_PAD,
        bytes_accessed=x.size * x.dtype.itemsize + weight_bytes + B * OUT_PAD * 4,
    )

    const = lambda i: (0, 0)  # weights/biases: same block every grid step -> VMEM-resident
    out_flat = pl.pallas_call(
        generator_kernel,
        out_shape=jax.ShapeDtypeStruct((B, OUT_PAD), jnp.float32),
        grid_spec=pltpu.PrefetchScalarGridSpec(
            num_scalar_prefetch=0,
            grid=grid,
            in_specs=[
                pl.BlockSpec((TB, L), lambda i: (i, 0)),        # x   (row-tiled)
                pl.BlockSpec((L, HIDDEN), const),               # w1
                pl.BlockSpec((1, HIDDEN), const),               # b1
                pl.BlockSpec((HIDDEN, HIDDEN), const),          # w2
                pl.BlockSpec((1, HIDDEN), const),               # b2
                pl.BlockSpec((HIDDEN, OUT_PAD), const),         # w3 (padded)
                pl.BlockSpec((1, OUT_PAD), const),              # b3 (padded)
            ],
            out_specs=pl.BlockSpec((TB, OUT_PAD), lambda i: (i, 0)),
        ),
        compiler_params=pltpu.CompilerParams(
            dimension_semantics=("parallel",),   # shard batch tiles across TCs on v7x
        ),
        cost_estimate=cost,
    )(x, w1, b1, w2, b2, w3, b3)

    # Keep lane-dense as long as possible; slice off the 896->784 pad, then mirror
    # torch's output.view(batch, 1, 28, 28).
    # TODO(synk): downstream consumers that accept the flat (B, 784) layout should
    # skip this reshape to avoid a lane-sparse (last dim 28) relayout.
    return out_flat[:, :OUT_REAL].reshape(B, 1, 28, 28)


def init_params(key, latent_size):
    """Deterministic synthetic init mimicking nn.Linear's uniform(-1/sqrt(fan_in), ...).

    Weights are stored as (in_features, out_features) in bf16; biases in f32.
    Layer 3 is zero-padded from 784 to 896 output columns.
    """
    ks = jax.random.split(key, 6)

    def linear_init(kw, kb, fan_in, fan_out):
        bound = 1.0 / jnp.sqrt(jnp.float32(fan_in))
        w = jax.random.uniform(kw, (fan_in, fan_out), jnp.float32, -bound, bound)
        b = jax.random.uniform(kb, (1, fan_out), jnp.float32, -bound, bound)
        return w.astype(jnp.bfloat16), b

    w1, b1 = linear_init(ks[0], ks[1], latent_size, HIDDEN)
    w2, b2 = linear_init(ks[2], ks[3], HIDDEN, HIDDEN)
    w3, b3 = linear_init(ks[4], ks[5], HIDDEN, OUT_REAL)
    # Pad layer-3 width 784 -> 896 (7x128) for lane-dense stores.
    w3 = jnp.pad(w3, ((0, 0), (0, OUT_PAD - OUT_REAL)))
    b3 = jnp.pad(b3, ((0, 0), (0, OUT_PAD - OUT_REAL)))
    return (w1, b1, w2, b2, w3, b3)


def reference_forward(x, params):
    """Pure-JAX reference of the same math (bf16 weights, f32 accumulate)."""
    w1, b1, w2, b2, w3, b3 = params
    wdt = w1.dtype
    h1 = jnp.maximum(jnp.dot(x.astype(wdt), w1, preferred_element_type=jnp.float32) + b1, 0.0)
    h2 = jnp.maximum(jnp.dot(h1.astype(wdt), w2, preferred_element_type=jnp.float32) + b2, 0.0)
    h3 = jnp.tanh(jnp.dot(h2.astype(wdt), w3, preferred_element_type=jnp.float32) + b3)
    return h3[:, :OUT_REAL].reshape(x.shape[0], 1, 28, 28)


if __name__ == "__main__":
    latent_size = 64

    key = jax.random.PRNGKey(0)
    k_params, k_x1, k_x2 = jax.random.split(key, 3)
    params = init_params(k_params, latent_size)

    # Small case (single grid step).
    batch = 8
    x_small = jax.random.normal(k_x1, (batch, latent_size), jnp.float32)
    out_small = jax.block_until_ready(generator_forward(x_small, params))
    ref_small = reference_forward(x_small, params)
    assert out_small.shape == (batch, 1, 28, 28)
    assert jnp.allclose(out_small, ref_small, atol=1e-2, rtol=1e-2)

    # Larger, uneven batch to exercise the batch-tiled grid (3 steps, ragged tail).
    big_batch = 1040
    x_big = jax.random.normal(k_x2, (big_batch, latent_size), jnp.float32)
    out_big = jax.block_until_ready(generator_forward(x_big, params, block_b=512))
    ref_big = reference_forward(x_big, params)
    assert out_big.shape == (big_batch, 1, 28, 28)
    assert jnp.allclose(out_big, ref_big, atol=1e-2, rtol=1e-2)

    print("KERNEL_OK")
</pallas_src>

<mosaic_0001>
module attributes {stable_mosaic.version = 11 : i64} {
  func.func @generator_kernel(%arg0: i32, %arg1: memref<8x64xf32, #tpu.memory_space<vmem>>, %arg2: memref<64x256xbf16, #tpu.memory_space<vmem>>, %arg3: memref<1x256xf32, #tpu.memory_space<vmem>>, %arg4: memref<256x256xbf16, #tpu.memory_space<vmem>>, %arg5: memref<1x256xf32, #tpu.memory_space<vmem>>, %arg6: memref<256x896xbf16, #tpu.memory_space<vmem>>, %arg7: memref<1x896xf32, #tpu.memory_space<vmem>>, %arg8: memref<8x896xf32, #tpu.memory_space<vmem>>) attributes {dimension_semantics = [#tpu.dimension_semantics<parallel>], iteration_bounds = array<i64: 1>, scalar_prefetch = 0 : i64, scratch_operands = 0 : i64, tpu.core_type = #tpu.core_type<tc>, window_params = [{transform_indices = @transform_0, window_bounds = array<i64: 8, 64>}, {pipeline_mode = #tpu.pipeline_mode<synchronous>, transform_indices = @transform_1, window_bounds = array<i64: 64, 256>}, {pipeline_mode = #tpu.pipeline_mode<synchronous>, transform_indices = @transform_2, window_bounds = array<i64: 1, 256>}, {pipeline_mode = #tpu.pipeline_mode<synchronous>, transform_indices = @transform_3, window_bounds = array<i64: 256, 256>}, {pipeline_mode = #tpu.pipeline_mode<synchronous>, transform_indices = @transform_4, window_bounds = array<i64: 1, 256>}, {pipeline_mode = #tpu.pipeline_mode<synchronous>, transform_indices = @transform_5, window_bounds = array<i64: 256, 896>}, {pipeline_mode = #tpu.pipeline_mode<synchronous>, transform_indices = @transform_6, window_bounds = array<i64: 1, 896>}, {transform_indices = @transform_7, window_bounds = array<i64: 8, 896>}]} {
    %c0 = arith.constant 0 : index
    %c0_0 = arith.constant 0 : index
    %0 = vector.load %arg1[%c0, %c0_0] : memref<8x64xf32, #tpu.memory_space<vmem>>, vector<8x64xf32>
    %1 = arith.truncf %0 : vector<8x64xf32> to vector<8x64xbf16>
    %c0_1 = arith.constant 0 : index
    %c0_2 = arith.constant 0 : index
    %2 = vector.load %arg2[%c0_1, %c0_2] : memref<64x256xbf16, #tpu.memory_space<vmem>>, vector<64x256xbf16>
    %cst = arith.constant dense<0.000000e+00> : vector<8x256xf32>
    %3 = tpu.matmul %1, %2, %cst {dimension_numbers = #tpu.dot_dimension_numbers<[1], [0], [0], [1], [0, 0, 1, 1], [], []>} : vector<8x64xbf16>, vector<64x256xbf16>, vector<8x256xf32> -> vector<8x256xf32>
    %c0_3 = arith.constant 0 : index
    %c0_4 = arith.constant 0 : index
    %4 = vector.load %arg3[%c0_3, %c0_4] : memref<1x256xf32, #tpu.memory_space<vmem>>, vector<1x256xf32>
    %5 = vector.broadcast %4 : vector<1x256xf32> to vector<8x256xf32>
    %6 = arith.addf %3, %5 : vector<8x256xf32>
    %cst_5 = arith.constant 0.000000e+00 : f32
    %7 = vector.broadcast %cst_5 : f32 to vector<8x256xf32>
    %8 = arith.maximumf %6, %7 : vector<8x256xf32>
    %9 = arith.truncf %8 : vector<8x256xf32> to vector<8x256xbf16>
    %c0_6 = arith.constant 0 : index
    %c0_7 = arith.constant 0 : index
    %10 = vector.load %arg4[%c0_6, %c0_7] : memref<256x256xbf16, #tpu.memory_space<vmem>>, vector<256x256xbf16>
    %cst_8 = arith.constant dense<0.000000e+00> : vector<8x256xf32>
    %11 = tpu.matmul %9, %10, %cst_8 {dimension_numbers = #tpu.dot_dimension_numbers<[1], [0], [0], [1], [0, 0, 1, 1], [], []>} : vector<8x256xbf16>, vector<256x256xbf16>, vector<8x256xf32> -> vector<8x256xf32>
    %c0_9 = arith.constant 0 : index
    %c0_10 = arith.constant 0 : index
    %12 = vector.load %arg5[%c0_9, %c0_10] : memref<1x256xf32, #tpu.memory_space<vmem>>, vector<1x256xf32>
    %13 = vector.broadcast %12 : vector<1x256xf32> to vector<8x256xf32>
    %14 = arith.addf %11, %13 : vector<8x256xf32>
    %cst_11 = arith.constant 0.000000e+00 : f32
    %15 = vector.broadcast %cst_11 : f32 to vector<8x256xf32>
    %16 = arith.maximumf %14, %15 : vector<8x256xf32>
    %17 = arith.truncf %16 : vector<8x256xf32> to vector<8x256xbf16>
    %c0_12 = arith.constant 0 : index
    %c0_13 = arith.constant 0 : index
    %18 = vector.load %arg6[%c0_12, %c0_13] : memref<256x896xbf16, #tpu.memory_space<vmem>>, vector<256x896xbf16>
    %cst_14 = arith.constant dense<0.000000e+00> : vector<8x896xf32>
    %19 = tpu.matmul %17, %18, %cst_14 {dimension_numbers = #tpu.dot_dimension_numbers<[1], [0], [0], [1], [0, 0, 1, 1], [], []>} : vector<8x256xbf16>, vector<256x896xbf16>, vector<8x896xf32> -> vector<8x896xf32>
    %c0_15 = arith.constant 0 : index
    %c0_16 = arith.constant 0 : index
    %20 = vector.load %arg7[%c0_15, %c0_16] : memref<1x896xf32, #tpu.memory_space<vmem>>, vector<1x896xf32>
    %21 = vector.broadcast %20 : vector<1x896xf32> to vector<8x896xf32>
    %22 = arith.addf %19, %21 : vector<8x896xf32>
    %23 = math.tanh %22 : vector<8x896xf32>
    %c0_17 = arith.constant 0 : index
    %c0_18 = arith.constant 0 : index
    %24 = vector.load %arg8[%c0_17, %c0_18] : memref<8x896xf32, #tpu.memory_space<vmem>>, vector<8x896xf32>
    tpu.vector_store %arg8[%c0_17, %c0_18], %23 {strides = array<i32>} : memref<8x896xf32, #tpu.memory_space<vmem>>, vector<8x896xf32>,
    return
  }
  func.func @transform_0(%arg0: i32) -> (i32, i32) {
    %c0_i32 = arith.constant 0 : i32
    %c0_i32_0 = arith.constant 0 : i32
    return %arg0, %c0_i32 : i32, i32
  }
  func.func @transform_1(%arg0: i32) -> (i32, i32) {
    %c0_i32 = arith.constant 0 : i32
    %c0_i32_0 = arith.constant 0 : i32
    %c0_i32_1 = arith.constant 0 : i32
    return %c0_i32, %c0_i32_0 : i32, i32
  }
  func.func @transform_2(%arg0: i32) -> (i32, i32) {
    %c0_i32 = arith.constant 0 : i32
    %c0_i32_0 = arith.constant 0 : i32
    %c0_i32_1 = arith.constant 0 : i32
    return %c0_i32, %c0_i32_0 : i32, i32
  }
  func.func @transform_3(%arg0: i32) -> (i32, i32) {
    %c0_i32 = arith.constant 0 : i32
    %c0_i32_0 = arith.constant 0 : i32
    %c0_i32_1 = arith.constant 0 : i32
    return %c0_i32, %c0_i32_0 : i32, i32
  }
  func.func @transform_4(%arg0: i32) -> (i32, i32) {
    %c0_i32 = arith.constant 0 : i32
    %c0_i32_0 = arith.constant 0 : i32
    %c0_i32_1 = arith.constant 0 : i32
    return %c0_i32, %c0_i32_0 : i32, i32
  }
  func.func @transform_5(%arg0: i32) -> (i32, i32) {
    %c0_i32 = arith.constant 0 : i32
    %c0_i32_0 = arith.constant 0 : i32
    %c0_i32_1 = arith.constant 0 : i32
    return %c0_i32, %c0_i32_0 : i32, i32
  }
  func.func @transform_6(%arg0: i32) -> (i32, i32) {
    %c0_i32 = arith.constant 0 : i32
    %c0_i32_0 = arith.constant 0 : i32
    %c0_i32_1 = arith.constant 0 : i32
    return %c0_i32, %c0_i32_0 : i32, i32
  }
  func.func @transform_7(%arg0: i32) -> (i32, i32) {
    %c0_i32 = arith.constant 0 : i32
    %c0_i32_0 = arith.constant 0 : i32
    return %arg0, %c0_i32 : i32, i32
  }
}

</mosaic_0001>

<llo_original>
// kernel: tpu_custom_call.1
$region0: #{tpu_custom_call.1}
  #allocation0 [shape = 'u32[]', space=smem, size = 0x4, offset = 0x4, fixed_abs, tag = 'smem constant byte address 0x4 - core index']
  #allocation1 [shape = 'u32[144,128]{1,0:T(1,128)}', space=vmem, size = 0x12000, scoped, tag = 'internal scratch']
  %s0 = inlined_call_operand.hbm [shape: f32[8,64], index: 0, kind: input, shape index: {}]
  %s1 = inlined_call_operand.hbm [shape: bf16[64,256], index: 1, kind: input, shape index: {}]
  %s2 = inlined_call_operand.vmem [shape: f32[1,256], index: 2, kind: input, shape index: {}]
  %s3 = inlined_call_operand.hbm [shape: bf16[256,256], index: 3, kind: input, shape index: {}]
  %s4 = inlined_call_operand.hbm [shape: f32[1,256], index: 4, kind: input, shape index: {}]
  %s5 = inlined_call_operand.hbm [shape: bf16[256,896], index: 5, kind: input, shape index: {}]
  %s6 = inlined_call_operand.vmem [shape: f32[1,896], index: 6, kind: input, shape index: {}]
  %s7 = inlined_call_operand.hbm [shape: f32[8,896], index: 7, kind: output, shape index: {}]
  %s8 = sld [smem:[#allocation0]]
  $region58: #{tpu_custom_call.1} parent=0
    _
  %s10 = ssub.s32 1, %s8
  %s11 = scalar_select 0, %s10, %s8
  $region1: #{tpu_custom_call.1} parent=0
    #allocation2 [shape = 'u8[4096]{0}', space=vmem, size = 0x1000, scoped, tag = 'input window, operand 0, single buffered']
    #allocation3 [shape = 's32[1]{0}', space=sflag, size = 0x4, scoped, tag = 'scoped memory for tpu_custom_call.1']
    #allocation4 [shape = 's32[1]{0}', space=sflag, size = 0x4, scoped, tag = 'scoped memory for tpu_custom_call.1']
    #allocation5 [shape = 'u8[32768]{0}', space=vmem, size = 0x8000, scoped, tag = 'input window, operand 1, single buffered']
    #allocation6 [shape = 's32[1]{0}', space=sflag, size = 0x4, scoped, tag = 'scoped memory for tpu_custom_call.1']
    #allocation7 [shape = 'u8[131072]{0}', space=vmem, size = 0x20000, scoped, tag = 'input window, operand 3, single buffered']
    #allocation8 [shape = 'u8[1024]{0}', space=vmem, size = 0x400, scoped, tag = 'input window, operand 4, single buffered']
    #allocation9 [shape = 's32[1]{0}', space=sflag, size = 0x4, scoped, tag = 'scoped memory for tpu_custom_call.1']
    #allocation10 [shape = 'u8[458752]{0}', space=vmem, size = 0x70000, scoped, tag = 'input window, operand 5, single buffered']
    #allocation11 [shape = 'u8[28672]{0}', space=vmem, size = 0x7000, scoped, tag = 'output window, operand 0, single buffered']
    %12 = vsyncpa [#allocation3], 0
    %13 = vsyncpa [#allocation6], 0
    %14 = vsyncpa [#allocation9], 0
    %15 = vsyncpa [#allocation4], 0
    // Predicated region
    $region2: #{tpu_custom_call.1} parent=1 // pred_check
      _
    $region3: #{tpu_custom_call.1} parent=1 // pred_check_branch
      %17 = sbr.rel (0) target = $region5
    $region4: #{tpu_custom_call.1} parent=1 // pred_region
      %s19 = ssub.s32 128, 128
      %20 = vsyncadd [#allocation3], %s19
      %s22 = sshll.u32 [#allocation2], 4
      %s23 = int_to_ptr.vmem [resolvable:$true] %s22
      %25 = dma.hbm_to_vmem [thread:$0]  %s0, 128, %s23, [#allocation3]
    $region5: #{tpu_custom_call.1} parent=1 // pred_fallthru
      _
    // Predicated region
    $region6: #{tpu_custom_call.1} parent=1 // pred_check
      _
    $region7: #{tpu_custom_call.1} parent=1 // pred_check_branch
      %27 = sbr.rel (0) target = $region9
    $region8: #{tpu_custom_call.1} parent=1 // pred_region
      %s29 = ssub.s32 1024, 1024
      %30 = vsyncadd [#allocation6], %s29
      %s31 = sshll.u32 [#allocation5], 4
      %s32 = int_to_ptr.vmem [resolvable:$true] %s31
      %37 = dma.hbm_to_vmem [thread:$0]  %s1, 1024, %s32, [#allocation6], 128, 128, 8
    $region9: #{tpu_custom_call.1} parent=1 // pred_fallthru
      _
    // Predicated region
    $region10: #{tpu_custom_call.1} parent=1 // pred_check
      _
    $region11: #{tpu_custom_call.1} parent=1 // pred_check_branch
      %39 = sbr.rel (0) target = $region13
    $region12: #{tpu_custom_call.1} parent=1 // pred_region
      _
    $region13: #{tpu_custom_call.1} parent=1 // pred_fallthru
      _
    // Predicated region
    $region14: #{tpu_custom_call.1} parent=1 // pred_check
      _
    $region15: #{tpu_custom_call.1} parent=1 // pred_check_branch
      %41 = sbr.rel (0) target = $region17
    $region16: #{tpu_custom_call.1} parent=1 // pred_region
      %s43 = ssub.s32 4096, 4096
      %44 = vsyncadd [#allocation6], %s43
      %s45 = sshll.u32 [#allocation7], 4
      %s46 = int_to_ptr.vmem [resolvable:$true] %s45
      %51 = dma.hbm_to_vmem [thread:$0]  %s3, 4096, %s46, [#allocation6], 128, 128, 8
    $region17: #{tpu_custom_call.1} parent=1 // pred_fallthru
      _
    // Predicated region
    $region18: #{tpu_custom_call.1} parent=1 // pred_check
      _
    $region19: #{tpu_custom_call.1} parent=1 // pred_check_branch
      %53 = sbr.rel (0) target = $region21
    $region20: #{tpu_custom_call.1} parent=1 // pred_region
      %s55 = ssub.s32 32, 32
      %56 = vsyncadd [#allocation9], %s55
      %s58 = sshll.u32 [#allocation8], 4
      %s59 = int_to_ptr.vmem [resolvable:$true] %s58
      %61 = dma.hbm_to_vmem [thread:$0]  %s4, 32, %s59, [#allocation9]
    $region21: #{tpu_custom_call.1} parent=1 // pred_fallthru
      _
    // Predicated region
    $region22: #{tpu_custom_call.1} parent=1 // pred_check
      _
    $region23: #{tpu_custom_call.1} parent=1 // pred_check_branch
      %63 = sbr.rel (0) target = $region25
    $region24: #{tpu_custom_call.1} parent=1 // pred_region
      %s65 = ssub.s32 14336, 14336
      %66 = vsyncadd [#allocation9], %s65
      %s67 = sshll.u32 [#allocation10], 4
      %s68 = int_to_ptr.vmem [resolvable:$true] %s67
      %73 = dma.hbm_to_vmem [thread:$0]  %s5, 14336, %s68, [#allocation9], 448, 448, 28
    $region25: #{tpu_custom_call.1} parent=1 // pred_fallthru
      _
    // Predicated region
    $region26: #{tpu_custom_call.1} parent=1 // pred_check
      _
    $region27: #{tpu_custom_call.1} parent=1 // pred_check_branch
      %75 = sbr.rel (0) target = $region29
    $region28: #{tpu_custom_call.1} parent=1 // pred_region
      _
    $region29: #{tpu_custom_call.1} parent=1 // pred_fallthru
      _
    // Predicated region
    $region30: #{tpu_custom_call.1} parent=1 // pred_check
      _
    $region31: #{tpu_custom_call.1} parent=1 // pred_check_branch
      %77 = sbr.rel (0) target = $region33
    $region32: #{tpu_custom_call.1} parent=1 // pred_region
      %78 = dma.done [#allocation3], 128
    $region33: #{tpu_custom_call.1} parent=1 // pred_fallthru
      _
    // Predicated region
    $region34: #{tpu_custom_call.1} parent=1 // pred_check
      _
    $region35: #{tpu_custom_call.1} parent=1 // pred_check_branch
      %80 = sbr.rel (0) target = $region37
    $region36: #{tpu_custom_call.1} parent=1 // pred_region
      %81 = dma.done [#allocation6], 1024
    $region37: #{tpu_custom_call.1} parent=1 // pred_fallthru
      _
    // Predicated region
    $region38: #{tpu_custom_call.1} parent=1 // pred_check
      _
    $region39: #{tpu_custom_call.1} parent=1 // pred_check_branch
      %83 = sbr.rel (0) target = $region41
    $region40: #{tpu_custom_call.1} parent=1 // pred_region
      %84 = dma.done [#allocation6], 4096
    $region41: #{tpu_custom_call.1} parent=1 // pred_fallthru
      _
    // Predicated region
    $region42: #{tpu_custom_call.1} parent=1 // pred_check
      _
    $region43: #{tpu_custom_call.1} parent=1 // pred_check_branch
      %86 = sbr.rel (0) target = $region45
    $region44: #{tpu_custom_call.1} parent=1 // pred_region
      %87 = dma.done [#allocation9], 32
    $region45: #{tpu_custom_call.1} parent=1 // pred_fallthru
      _
    // Predicated region
    $region46: #{tpu_custom_call.1} parent=1 // pred_check
      _
    $region47: #{tpu_custom_call.1} parent=1 // pred_check_branch
      %89 = sbr.rel (0) target = $region49
    $region48: #{tpu_custom_call.1} parent=1 // pred_region
      %90 = dma.done [#allocation9], 14336
    $region49: #{tpu_custom_call.1} parent=1 // pred_fallthru
      _
    %v92 = vld [vmem:[#allocation2] sm:$0xff]
    %v93 = vpack.c.bf16 %v92, %v92
    %v94 = vld [vmem:[#allocation5] sm:$0xff]
    %v95 = vld [vmem:[#allocation5 + $0x8] sm:$0xff]
    %v96 = vld [vmem:[#allocation5 + $0x10] sm:$0xff]
    %v97 = vld [vmem:[#allocation5 + $0x18] sm:$0xff]
    %v98 = vld [vmem:[#allocation5 + $0x20] sm:$0xff]
    %v99 = vld [vmem:[#allocation5 + $0x28] sm:$0xff]
    %v100 = vld [vmem:[#allocation5 + $0x30] sm:$0xff]
    %v101 = vld [vmem:[#allocation5 + $0x38] sm:$0xff]
    %v102 = vld [vmem:[%s2] sm:$0x3]
    %v104 = vlaneseq
    %v105 = vshrl.u32 %v104, 7
    %v106 = vsub.s32 0, %v105
    %v107 = vrot.slane %v102, %v106
    %v108 = vlaneseq
    %v109 = vshrl.u32 %v108, 7
    %v110 = vsub.s32 1, %v109
    %v111 = vrot.slane %v102, %v110
    %v122 = vunpack.c.l.b16 %v94
    %v123 = vunpack.c.h.b16 %v94
    %v124 = vunpack.c.l.b16 %v95
    %v125 = vunpack.c.h.b16 %v95
    %v126 = vunpack.c.l.b16 %v96
    %v127 = vunpack.c.h.b16 %v96
    %v128 = vunpack.c.l.b16 %v97
    %v129 = vunpack.c.h.b16 %v97
    %v130 = vunpack.c.l.b16 %v98
    %v131 = vunpack.c.h.b16 %v98
    %v132 = vunpack.c.l.b16 %v99
    %v133 = vunpack.c.h.b16 %v99
    %v134 = vunpack.c.l.b16 %v100
    %v135 = vunpack.c.h.b16 %v100
    %v136 = vunpack.c.l.b16 %v101
    %v137 = vunpack.c.h.b16 %v101
    %v138 = vpack.c.b16 %v124, %v122
    %v139 = vpack.c.b16 %v125, %v123
    %v140 = vpack.c.b16 %v128, %v126
    %v141 = vpack.c.b16 %v129, %v127
    %v142 = vpack.c.b16 %v132, %v130
    %v143 = vpack.c.b16 %v133, %v131
    %v144 = vpack.c.b16 %v136, %v134
    %v145 = vpack.c.b16 %v137, %v135
    %vm154 = vcmask 523264
    %v156 = vsel %vm154, %v93, 0
    %158 = vmatprep.subr.bf16.mxu0 0
    %159 = vmatpush1.bf16.msra.mxu0 0
    %160 = vmatprep.subr.bf16.mxu0 0
    %161 = vmatpush1.bf16.msra.mxu0 0
    %162 = vmatprep.subr.bf16.mxu0 0
    %163 = vmatpush1.bf16.msra.mxu0 0
    %164 = vmatprep.subr.bf16.mxu0 0
    %165 = vmatpush1.bf16.msra.mxu0 0
    %166 = vmatprep.subr.bf16.mxu0 %v145
    %167 = vmatpush1.bf16.msra.mxu0 %v144
    %168 = vmatprep.subr.bf16.mxu0 %v143
    %169 = vmatpush1.bf16.msra.mxu0 %v142
    %170 = vmatprep.subr.bf16.mxu0 %v141
    %171 = vmatpush1.bf16.msra.mxu0 %v140
    %172 = vmatprep.subr.bf16.mxu0 %v139
    %173 = vmatpush1.bf16.msra.mxu0 %v138
    %174 = vmatprep.subr.bf16.mxu0 0
    %175 = vmatpush2.bf16.msra.mxu0 0
    %176 = vmatprep.subr.bf16.mxu0 0
    %177 = vmatpush2.bf16.msra.mxu0 0
    %178 = vmatprep.subr.bf16.mxu0 0
    %179 = vmatpush2.bf16.msra.mxu0 0
    %180 = vmatprep.subr.bf16.mxu0 0
    %181 = vmatpush2.bf16.msra.mxu0 0
    %182 = vmatprep.subr.bf16.mxu0 0
    %183 = vmatpush2.bf16.msra.mxu0 0
    %184 = vmatprep.subr.bf16.mxu0 0
    %185 = vmatpush2.bf16.msra.mxu0 0
    %186 = vmatprep.subr.bf16.mxu0 0
    %187 = vmatpush2.bf16.msra.mxu0 0
    %188 = vmatprep.subr.bf16.mxu0 0
    %189 = vmatpush2.bf16.msra.mxu0 0
    %190 = vmatprep.mubr.bf16.mxu0 0
    %191 = vmatmul.mubr.bf16.gmra.mxu0 %v156
    %v192 = vpop.f32.mrf.mxu0
    %v193 = vadd.f32 %v107, %v192
    %v194 = vpop.f32.mrf.mxu0
    %v195 = vadd.f32 %v111, %v194
    %v196 = vpop.f32.mrf.mxu0
    %v197 = vpop.f32.mrf.mxu0
    %198 = vdwg.mxu0
    %v199 = vmax.f32 %v193, 0.0
    %v200 = vmax.f32 %v195, 0.0
    %v201 = vpack.c.bf16 %v199, %v199
    %v202 = vpack.c.bf16 %v200, %v200
    %v203 = vld [vmem:[#allocation7] sm:$0xff]
    %v204 = vld [vmem:[#allocation7 + $0x8] sm:$0xff]
    %v205 = vld [vmem:[#allocation7 + $0x10] sm:$0xff]
    %v206 = vld [vmem:[#allocation7 + $0x18] sm:$0xff]
    %v207 = vld [vmem:[#allocation7 + $0x20] sm:$0xff]
    %v208 = vld [vmem:[#allocation7 + $0x28] sm:$0xff]
    %v209 = vld [vmem:[#allocation7 + $0x30] sm:$0xff]
    %v210 = vld [vmem:[#allocation7 + $0x38] sm:$0xff]
    %v211 = vld [vmem:[#allocation7 + $0x40] sm:$0xff]
    %v212 = vld [vmem:[#allocation7 + $0x48] sm:$0xff]
    %v213 = vld [vmem:[#allocation7 + $0x50] sm:$0xff]
    %v214 = vld [vmem:[#allocation7 + $0x58] sm:$0xff]
    %v215 = vld [vmem:[#allocation7 + $0x60] sm:$0xff]
    %v216 = vld [vmem:[#allocation7 + $0x68] sm:$0xff]
    %v217 = vld [vmem:[#allocation7 + $0x70] sm:$0xff]
    %v218 = vld [vmem:[#allocation7 + $0x78] sm:$0xff]
    %v219 = vld [vmem:[#allocation7 + $0x80] sm:$0xff]
    %v220 = vld [vmem:[#allocation7 + $0x88] sm:$0xff]
    %v221 = vld [vmem:[#allocation7 + $0x90] sm:$0xff]
    %v222 = vld [vmem:[#allocation7 + $0x98] sm:$0xff]
    %v223 = vld [vmem:[#allocation7 + $0xa0] sm:$0xff]
    %v224 = vld [vmem:[#allocation7 + $0xa8] sm:$0xff]
    %v225 = vld [vmem:[#allocation7 + $0xb0] sm:$0xff]
    %v226 = vld [vmem:[#allocation7 + $0xb8] sm:$0xff]
    %v227 = vld [vmem:[#allocation7 + $0xc0] sm:$0xff]
    %v228 = vld [vmem:[#allocation7 + $0xc8] sm:$0xff]
    %v229 = vld [vmem:[#allocation7 + $0xd0] sm:$0xff]
    %v230 = vld [vmem:[#allocation7 + $0xd8] sm:$0xff]
    %v231 = vld [vmem:[#allocation7 + $0xe0] sm:$0xff]
    %v232 = vld [vmem:[#allocation7 + $0xe8] sm:$0xff]
    %v233 = vld [vmem:[#allocation7 + $0xf0] sm:$0xff]
    %v234 = vld [vmem:[#allocation7 + $0xf8] sm:$0xff]
    %v235 = vld [vmem:[#allocation8] sm:$0x3]
    %v237 = vlaneseq
    %v238 = vshrl.u32 %v237, 7
    %v239 = vsub.s32 0, %v238
    %v240 = vrot.slane %v235, %v239
    %v241 = vlaneseq
    %v242 = vshrl.u32 %v241, 7
    %v243 = vsub.s32 1, %v242
    %v244 = vrot.slane %v235, %v243
    %v279 = vunpack.c.l.b16 %v203
    %v280 = vunpack.c.h.b16 %v203
    %v281 = vunpack.c.l.b16 %v204
    %v282 = vunpack.c.h.b16 %v204
    %v283 = vunpack.c.l.b16 %v205
    %v284 = vunpack.c.h.b16 %v205
    %v285 = vunpack.c.l.b16 %v206
    %v286 = vunpack.c.h.b16 %v206
    %v287 = vunpack.c.l.b16 %v207
    %v288 = vunpack.c.h.b16 %v207
    %v289 = vunpack.c.l.b16 %v208
    %v290 = vunpack.c.h.b16 %v208
    %v291 = vunpack.c.l.b16 %v209
    %v292 = vunpack.c.h.b16 %v209
    %v293 = vunpack.c.l.b16 %v210
    %v294 = vunpack.c.h.b16 %v210
    %v295 = vunpack.c.l.b16 %v211
    %v296 = vunpack.c.h.b16 %v211
    %v297 = vunpack.c.l.b16 %v212
    %v298 = vunpack.c.h.b16 %v212
    %v299 = vunpack.c.l.b16 %v213
    %v300 = vunpack.c.h.b16 %v213
    %v301 = vunpack.c.l.b16 %v214
    %v302 = vunpack.c.h.b16 %v214
    %v303 = vunpack.c.l.b16 %v215
    %v304 = vunpack.c.h.b16 %v215
    %v305 = vunpack.c.l.b16 %v216
    %v306 = vunpack.c.h.b16 %v216
    %v307 = vunpack.c.l.b16 %v217
    %v308 = vunpack.c.h.b16 %v217
    %v309 = vunpack.c.l.b16 %v218
    %v310 = vunpack.c.h.b16 %v218
    %v311 = vunpack.c.l.b16 %v219
    %v312 = vunpack.c.h.b16 %v219
    %v313 = vunpack.c.l.b16 %v220
    %v314 = vunpack.c.h.b16 %v220
    %v315 = vunpack.c.l.b16 %v221
    %v316 = vunpack.c.h.b16 %v221
    %v317 = vunpack.c.l.b16 %v222
    %v318 = vunpack.c.h.b16 %v222
    %v319 = vunpack.c.l.b16 %v223
    %v320 = vunpack.c.h.b16 %v223
    %v321 = vunpack.c.l.b16 %v224
    %v322 = vunpack.c.h.b16 %v224
    %v323 = vunpack.c.l.b16 %v225
    %v324 = vunpack.c.h.b16 %v225
    %v325 = vunpack.c.l.b16 %v226
    %v326 = vunpack.c.h.b16 %v226
    %v327 = vunpack.c.l.b16 %v227
    %v328 = vunpack.c.h.b16 %v227
    %v329 = vunpack.c.l.b16 %v228
    %v330 = vunpack.c.h.b16 %v228
    %v331 = vunpack.c.l.b16 %v229
    %v332 = vunpack.c.h.b16 %v229
    %v333 = vunpack.c.l.b16 %v230
    %v334 = vunpack.c.h.b16 %v230
    %v335 = vunpack.c.l.b16 %v231
    %v336 = vunpack.c.h.b16 %v231
    %v337 = vunpack.c.l.b16 %v232
    %v338 = vunpack.c.h.b16 %v232
    %v339 = vunpack.c.l.b16 %v233
    %v340 = vunpack.c.h.b16 %v233
    %v341 = vunpack.c.l.b16 %v234
    %v342 = vunpack.c.h.b16 %v234
    %v343 = vpack.c.b16 %v281, %v279
    %v344 = vpack.c.b16 %v282, %v280
    %v345 = vpack.c.b16 %v285, %v283
    %v346 = vpack.c.b16 %v286, %v284
    %v347 = vpack.c.b16 %v289, %v287
    %v348 = vpack.c.b16 %v290, %v288
    %v349 = vpack.c.b16 %v293, %v291
    %v350 = vpack.c.b16 %v294, %v292
    %v351 = vpack.c.b16 %v297, %v295
    %v352 = vpack.c.b16 %v298, %v296
    %v353 = vpack.c.b16 %v301, %v299
    %v354 = vpack.c.b16 %v302, %v300
    %v355 = vpack.c.b16 %v305, %v303
    %v356 = vpack.c.b16 %v306, %v304
    %v357 = vpack.c.b16 %v309, %v307
    %v358 = vpack.c.b16 %v310, %v308
    %v359 = vpack.c.b16 %v313, %v311
    %v360 = vpack.c.b16 %v314, %v312
    %v361 = vpack.c.b16 %v317, %v315
    %v362 = vpack.c.b16 %v318, %v316
    %v363 = vpack.c.b16 %v321, %v319
    %v364 = vpack.c.b16 %v322, %v320
    %v365 = vpack.c.b16 %v325, %v323
    %v366 = vpack.c.b16 %v326, %v324
    %v367 = vpack.c.b16 %v329, %v327
    %v368 = vpack.c.b16 %v330, %v328
    %v369 = vpack.c.b16 %v333, %v331
    %v370 = vpack.c.b16 %v334, %v332
    %v371 = vpack.c.b16 %v337, %v335
    %v372 = vpack.c.b16 %v338, %v336
    %v373 = vpack.c.b16 %v341, %v339
    %v374 = vpack.c.b16 %v342, %v340
    %407 = vmatprep.subr.bf16.mxu0 %v358
    %408 = vmatpush1.bf16.msra.mxu0 %v357
    %409 = vmatprep.subr.bf16.mxu0 %v356
    %410 = vmatpush1.bf16.msra.mxu0 %v355
    %411 = vmatprep.subr.bf16.mxu0 %v354
    %412 = vmatpush1.bf16.msra.mxu0 %v353
    %413 = vmatprep.subr.bf16.mxu0 %v352
    %414 = vmatpush1.bf16.msra.mxu0 %v351
    %415 = vmatprep.subr.bf16.mxu0 %v350
    %416 = vmatpush1.bf16.msra.mxu0 %v349
    %417 = vmatprep.subr.bf16.mxu0 %v348
    %418 = vmatpush1.bf16.msra.mxu0 %v347
    %419 = vmatprep.subr.bf16.mxu0 %v346
    %420 = vmatpush1.bf16.msra.mxu0 %v345
    %421 = vmatprep.subr.bf16.mxu0 %v344
    %422 = vmatpush1.bf16.msra.mxu0 %v343
    %423 = vmatprep.subr.bf16.mxu0 %v374
    %424 = vmatpush2.bf16.msra.mxu0 %v373
    %425 = vmatprep.subr.bf16.mxu0 %v372
    %426 = vmatpush2.bf16.msra.mxu0 %v371
    %427 = vmatprep.subr.bf16.mxu0 %v370
    %428 = vmatpush2.bf16.msra.mxu0 %v369
    %429 = vmatprep.subr.bf16.mxu0 %v368
    %430 = vmatpush2.bf16.msra.mxu0 %v367
    %431 = vmatprep.subr.bf16.mxu0 %v366
    %432 = vmatpush2.bf16.msra.mxu0 %v365
    %433 = vmatprep.subr.bf16.mxu0 %v364
    %434 = vmatpush2.bf16.msra.mxu0 %v363
    %435 = vmatprep.subr.bf16.mxu0 %v362
    %436 = vmatpush2.bf16.msra.mxu0 %v361
    %437 = vmatprep.subr.bf16.mxu0 %v360
    %438 = vmatpush2.bf16.msra.mxu0 %v359
    %439 = vmatprep.mubr.bf16.mxu0 %v202
    %440 = vmatmul.mubr.bf16.gmra.mxu0 %v201
    %v441 = vpop.f32.mrf.mxu0
    %v442 = vadd.f32 %v240, %v441
    %v443 = vpop.f32.mrf.mxu0
    %v444 = vadd.f32 %v244, %v443
    %v445 = vpop.f32.mrf.mxu0
    %v446 = vpop.f32.mrf.mxu0
    %447 = vdwg.mxu0
    %v448 = vmax.f32 %v442, 0.0
    %v449 = vmax.f32 %v444, 0.0
    %v450 = vpack.c.bf16 %v448, %v448
    %v451 = vpack.c.bf16 %v449, %v449
    %v452 = vld [vmem:[#allocation10] sm:$0xff]
    %v453 = vld [vmem:[#allocation10 + $0x8] sm:$0xff]
    %v454 = vld [vmem:[#allocation10 + $0x10] sm:$0xff]
    %v455 = vld [vmem:[#allocation10 + $0x18] sm:$0xf]
    %v456 = vld [vmem:[#allocation10 + $0x1c] sm:$0xff]
    %v457 = vld [vmem:[#allocation10 + $0x24] sm:$0xff]
    %v458 = vld [vmem:[#allocation10 + $0x2c] sm:$0xff]
    %v459 = vld [vmem:[#allocation10 + $0x34] sm:$0xf]
    %v460 = vld [vmem:[#allocation10 + $0x38] sm:$0xff]
    %v461 = vld [vmem:[#allocation10 + $0x40] sm:$0xff]
    %v462 = vld [vmem:[#allocation10 + $0x48] sm:$0xff]
    %v463 = vld [vmem:[#allocation10 + $0x50] sm:$0xf]
    %v464 = vld [vmem:[#allocation10 + $0x54] sm:$0xff]
    %v465 = vld [vmem:[#allocation10 + $0x5c] sm:$0xff]
    %v466 = vld [vmem:[#allocation10 + $0x64] sm:$0xff]
    %v467 = vld [vmem:[#allocation10 + $0x6c] sm:$0xf]
    %v468 = vld [vmem:[#allocation10 + $0x70] sm:$0xff]
    %v469 = vld [vmem:[#allocation10 + $0x78] sm:$0xff]
    %v470 = vld [vmem:[#allocation10 + $0x80] sm:$0xff]
    %v471 = vld [vmem:[#allocation10 + $0x88] sm:$0xf]
    %v472 = vld [vmem:[#allocation10 + $0x8c] sm:$0xff]
    %v473 = vld [vmem:[#allocation10 + $0x94] sm:$0xff]
    %v474 = vld [vmem:[#allocation10 + $0x9c] sm:$0xff]
    %v475 = vld [vmem:[#allocation10 + $0xa4] sm:$0xf]
    %v476 = vld [vmem:[#allocation10 + $0xa8] sm:$0xff]
    %v477 = vld [vmem:[#allocation10 + $0xb0] sm:$0xff]
    %v478 = vld [vmem:[#allocation10 + $0xb8] sm:$0xff]
    %v479 = vld [vmem:[#allocation10 + $0xc0] sm:$0xf]
    %v480 = vld [vmem:[#allocation10 + $0xc4] sm:$0xff]
    %v481 = vld [vmem:[#allocation10 + $0xcc] sm:$0xff]
    %v482 = vld [vmem:[#allocation10 + $0xd4] sm:$0xff]
    %v483 = vld [vmem:[#allocation10 + $0xdc] sm:$0xf]
    %v484 = vld [vmem:[#allocation10 + $0xe0] sm:$0xff]
    %v485 = vld [vmem:[#allocation10 + $0xe8] sm:$0xff]
    %v486 = vld [vmem:[#allocation10 + $0xf0] sm:$0xff]
    %v487 = vld [vmem:[#allocation10 + $0xf8] sm:$0xf]
    %v488 = vld [vmem:[#allocation10 + $0xfc] sm:$0xff]
    %v489 = vld [vmem:[#allocation10 + $0x104] sm:$0xff]
    %v490 = vld [vmem:[#allocation10 + $0x10c] sm:$0xff]
    %v491 = vld [vmem:[#allocation10 + $0x114] sm:$0xf]
    %v492 = vld [vmem:[#allocation10 + $0x118] sm:$0xff]
    %v493 = vld [vmem:[#allocation10 + $0x120] sm:$0xff]
    %v494 = vld [vmem:[#allocation10 + $0x128] sm:$0xff]
    %v495 = vld [vmem:[#allocation10 + $0x130] sm:$0xf]
    %v496 = vld [vmem:[#allocation10 + $0x134] sm:$0xff]
    %v497 = vld [vmem:[#allocation10 + $0x13c] sm:$0xff]
    %v498 = vld [vmem:[#allocation10 + $0x144] sm:$0xff]
    %v499 = vld [vmem:[#allocation10 + $0x14c] sm:$0xf]
    %v500 = vld [vmem:[#allocation10 + $0x150] sm:$0xff]
    %v501 = vld [vmem:[#allocation10 + $0x158] sm:$0xff]
    %v502 = vld [vmem:[#allocation10 + $0x160] sm:$0xff]
    %v503 = vld [vmem:[#allocation10 + $0x168] sm:$0xf]
    %v504 = vld [vmem:[#allocation10 + $0x16c] sm:$0xff]
    %v505 = vld [vmem:[#allocation10 + $0x174] sm:$0xff]
    %v506 = vld [vmem:[#allocation10 + $0x17c] sm:$0xff]
    %v507 = vld [vmem:[#allocation10 + $0x184] sm:$0xf]
    %v508 = vld [vmem:[#allocation10 + $0x188] sm:$0xff]
    %v509 = vld [vmem:[#allocation10 + $0x190] sm:$0xff]
    %v510 = vld [vmem:[#allocation10 + $0x198] sm:$0xff]
    %v511 = vld [vmem:[#allocation10 + $0x1a0] sm:$0xf]
    %v512 = vld [vmem:[#allocation10 + $0x1a4] sm:$0xff]
    %v513 = vld [vmem:[#allocation10 + $0x1ac] sm:$0xff]
    %v514 = vld [vmem:[#allocation10 + $0x1b4] sm:$0xff]
    %v515 = vld [vmem:[#allocation10 + $0x1bc] sm:$0xf]
    %v516 = vld [vmem:[#allocation10 + $0x1c0] sm:$0xff]
    %v517 = vld [vmem:[#allocation10 + $0x1c8] sm:$0xff]
    %v518 = vld [vmem:[#allocation10 + $0x1d0] sm:$0xff]
    %v519 = vld [vmem:[#allocation10 + $0x1d8] sm:$0xf]
    %v520 = vld [vmem:[#allocation10 + $0x1dc] sm:$0xff]
    %v521 = vld [vmem:[#allocation10 + $0x1e4] sm:$0xff]
    %v522 = vld [vmem:[#allocation10 + $0x1ec] sm:$0xff]
    %v523 = vld [vmem:[#allocation10 + $0x1f4] sm:$0xf]
    %v524 = vld [vmem:[#allocation10 + $0x1f8] sm:$0xff]
    %v525 = vld [vmem:[#allocation10 + $0x200] sm:$0xff]
    %v526 = vld [vmem:[#allocation10 + $0x208] sm:$0xff]
    %v527 = vld [vmem:[#allocation10 + $0x210] sm:$0xf]
    %v528 = vld [vmem:[#allocation10 + $0x214] sm:$0xff]
    %v529 = vld [vmem:[#allocation10 + $0x21c] sm:$0xff]
    %v530 = vld [vmem:[#allocation10 + $0x224] sm:$0xff]
    %v531 = vld [vmem:[#allocation10 + $0x22c] sm:$0xf]
    %v532 = vld [vmem:[#allocation10 + $0x230] sm:$0xff]
    %v533 = vld [vmem:[#allocation10 + $0x238] sm:$0xff]
    %v534 = vld [vmem:[#allocation10 + $0x240] sm:$0xff]
    %v535 = vld [vmem:[#allocation10 + $0x248] sm:$0xf]
    %v536 = vld [vmem:[#allocation10 + $0x24c] sm:$0xff]
    %v537 = vld [vmem:[#allocation10 + $0x254] sm:$0xff]
    %v538 = vld [vmem:[#allocation10 + $0x25c] sm:$0xff]
    %v539 = vld [vmem:[#allocation10 + $0x264] sm:$0xf]
    %v540 = vld [vmem:[#allocation10 + $0x268] sm:$0xff]
    %v541 = vld [vmem:[#allocation10 + $0x270] sm:$0xff]
    %v542 = vld [vmem:[#allocation10 + $0x278] sm:$0xff]
    %v543 = vld [vmem:[#allocation10 + $0x280] sm:$0xf]
    %v544 = vld [vmem:[#allocation10 + $0x284] sm:$0xff]
    %v545 = vld [vmem:[#allocation10 + $0x28c] sm:$0xff]
    %v546 = vld [vmem:[#allocation10 + $0x294] sm:$0xff]
    %v547 = vld [vmem:[#allocation10 + $0x29c] sm:$0xf]
    %v548 = vld [vmem:[#allocation10 + $0x2a0] sm:$0xff]
    %v549 = vld [vmem:[#allocation10 + $0x2a8] sm:$0xff]
    %v550 = vld [vmem:[#allocation10 + $0x2b0] sm:$0xff]
    %v551 = vld [vmem:[#allocation10 + $0x2b8] sm:$0xf]
    %v552 = vld [vmem:[#allocation10 + $0x2bc] sm:$0xff]
    %v553 = vld [vmem:[#allocation10 + $0x2c4] sm:$0xff]
    %v554 = vld [vmem:[#allocation10 + $0x2cc] sm:$0xff]
    %v555 = vld [vmem:[#allocation10 + $0x2d4] sm:$0xf]
    %v556 = vld [vmem:[#allocation10 + $0x2d8] sm:$0xff]
    %v557 = vld [vmem:[#allocation10 + $0x2e0] sm:$0xff]
    %v558 = vld [vmem:[#allocation10 + $0x2e8] sm:$0xff]
    %v559 = vld [vmem:[#allocation10 + $0x2f0] sm:$0xf]
    %v560 = vld [vmem:[#allocation10 + $0x2f4] sm:$0xff]
    %v561 = vld [vmem:[#allocation10 + $0x2fc] sm:$0xff]
    %v562 = vld [vmem:[#allocation10 + $0x304] sm:$0xff]
    %v563 = vld [vmem:[#allocation10 + $0x30c] sm:$0xf]
    %v564 = vld [vmem:[#allocation10 + $0x310] sm:$0xff]
    %v565 = vld [vmem:[#allocation10 + $0x318] sm:$0xff]
    %v566 = vld [vmem:[#allocation10 + $0x320] sm:$0xff]
    %v567 = vld [vmem:[#allocation10 + $0x328] sm:$0xf]
    %v568 = vld [vmem:[#allocation10 + $0x32c] sm:$0xff]
    %v569 = vld [vmem:[#allocation10 + $0x334] sm:$0xff]
    %v570 = vld [vmem:[#allocation10 + $0x33c] sm:$0xff]
    %v571 = vld [vmem:[#allocation10 + $0x344] sm:$0xf]
    %v572 = vld [vmem:[#allocation10 + $0x348] sm:$0xff]
    %v573 = vld [vmem:[#allocation10 + $0x350] sm:$0xff]
    %v574 = vld [vmem:[#allocation10 + $0x358] sm:$0xff]
    %v575 = vld [vmem:[#allocation10 + $0x360] sm:$0xf]
    %v576 = vld [vmem:[#allocation10 + $0x364] sm:$0xff]
    %v577 = vld [vmem:[#allocation10 + $0x36c] sm:$0xff]
    %v578 = vld [vmem:[#allocation10 + $0x374] sm:$0xff]
    %v579 = vld [vmem:[#allocation10 + $0x37c] sm:$0xf]
    %v580 = vld [vmem:[%s6] sm:$0xff]
    %v582 = vlaneseq
    %v583 = vshrl.u32 %v582, 7
    %v584 = vsub.s32 0, %v583
    %v585 = vrot.slane %v580, %v584
    %v586 = vlaneseq
    %v587 = vshrl.u32 %v586, 7
    %v588 = vsub.s32 1, %v587
    %v589 = vrot.slane %v580, %v588
    %v590 = vlaneseq
    %v591 = vshrl.u32 %v590, 7
    %v592 = vsub.s32 2, %v591
    %v593 = vrot.slane %v580, %v592
    %v594 = vlaneseq
    %v595 = vshrl.u32 %v594, 7
    %v596 = vsub.s32 3, %v595
    %v597 = vrot.slane %v580, %v596
    %v598 = vlaneseq
    %v599 = vshrl.u32 %v598, 7
    %v600 = vsub.s32 4, %v599
    %v601 = vrot.slane %v580, %v600
    %v602 = vlaneseq
    %v603 = vshrl.u32 %v602, 7
    %v604 = vsub.s32 5, %v603
    %v605 = vrot.slane %v580, %v604
    %v606 = vlaneseq
    %v607 = vshrl.u32 %v606, 7
    %v608 = vsub.s32 6, %v607
    %v609 = vrot.slane %v580, %v608
    %v745 = vunpack.c.l.b16 %v452
    %v746 = vunpack.c.h.b16 %v452
    %v747 = vunpack.c.l.b16 %v453
    %v748 = vunpack.c.h.b16 %v453
    %v749 = vunpack.c.l.b16 %v454
    %v750 = vunpack.c.h.b16 %v454
    %v751 = vunpack.c.l.b16 %v455
    %v752 = vunpack.c.l.b16 %v456
    %v753 = vunpack.c.h.b16 %v456
    %v754 = vunpack.c.l.b16 %v457
    %v755 = vunpack.c.h.b16 %v457
    %v756 = vunpack.c.l.b16 %v458
    %v757 = vunpack.c.h.b16 %v458
    %v758 = vunpack.c.l.b16 %v459
    %v759 = vunpack.c.l.b16 %v460
    %v760 = vunpack.c.h.b16 %v460
    %v761 = vunpack.c.l.b16 %v461
    %v762 = vunpack.c.h.b16 %v461
    %v763 = vunpack.c.l.b16 %v462
    %v764 = vunpack.c.h.b16 %v462
    %v765 = vunpack.c.l.b16 %v463
    %v766 = vunpack.c.l.b16 %v464
    %v767 = vunpack.c.h.b16 %v464
    %v768 = vunpack.c.l.b16 %v465
    %v769 = vunpack.c.h.b16 %v465
    %v770 = vunpack.c.l.b16 %v466
    %v771 = vunpack.c.h.b16 %v466
    %v772 = vunpack.c.l.b16 %v467
    %v773 = vunpack.c.l.b16 %v468
    %v774 = vunpack.c.h.b16 %v468
    %v775 = vunpack.c.l.b16 %v469
    %v776 = vunpack.c.h.b16 %v469
    %v777 = vunpack.c.l.b16 %v470
    %v778 = vunpack.c.h.b16 %v470
    %v779 = vunpack.c.l.b16 %v471
    %v780 = vunpack.c.l.b16 %v472
    %v781 = vunpack.c.h.b16 %v472
    %v782 = vunpack.c.l.b16 %v473
    %v783 = vunpack.c.h.b16 %v473
    %v784 = vunpack.c.l.b16 %v474
    %v785 = vunpack.c.h.b16 %v474
    %v786 = vunpack.c.l.b16 %v475
    %v787 = vunpack.c.l.b16 %v476
    %v788 = vunpack.c.h.b16 %v476
    %v789 = vunpack.c.l.b16 %v477
    %v790 = vunpack.c.h.b16 %v477
    %v791 = vunpack.c.l.b16 %v478
    %v792 = vunpack.c.h.b16 %v478
    %v793 = vunpack.c.l.b16 %v479
    %v794 = vunpack.c.l.b16 %v480
    %v795 = vunpack.c.h.b16 %v480
    %v796 = vunpack.c.l.b16 %v481
    %v797 = vunpack.c.h.b16 %v481
    %v798 = vunpack.c.l.b16 %v482
    %v799 = vunpack.c.h.b16 %v482
    %v800 = vunpack.c.l.b16 %v483
    %v801 = vunpack.c.l.b16 %v484
    %v802 = vunpack.c.h.b16 %v484
    %v803 = vunpack.c.l.b16 %v485
    %v804 = vunpack.c.h.b16 %v485
    %v805 = vunpack.c.l.b16 %v486
    %v806 = vunpack.c.h.b16 %v486
    %v807 = vunpack.c.l.b16 %v487
    %v808 = vunpack.c.l.b16 %v488
    %v809 = vunpack.c.h.b16 %v488
    %v810 = vunpack.c.l.b16 %v489
    %v811 = vunpack.c.h.b16 %v489
    %v812 = vunpack.c.l.b16 %v490
    %v813 = vunpack.c.h.b16 %v490
    %v814 = vunpack.c.l.b16 %v491
    %v815 = vunpack.c.l.b16 %v492
    %v816 = vunpack.c.h.b16 %v492
    %v817 = vunpack.c.l.b16 %v493
    %v818 = vunpack.c.h.b16 %v493
    %v819 = vunpack.c.l.b16 %v494
    %v820 = vunpack.c.h.b16 %v494
    %v821 = vunpack.c.l.b16 %v495
    %v822 = vunpack.c.l.b16 %v496
    %v823 = vunpack.c.h.b16 %v496
    %v824 = vunpack.c.l.b16 %v497
    %v825 = vunpack.c.h.b16 %v497
    %v826 = vunpack.c.l.b16 %v498
    %v827 = vunpack.c.h.b16 %v498
    %v828 = vunpack.c.l.b16 %v499
    %v829 = vunpack.c.l.b16 %v500
    %v830 = vunpack.c.h.b16 %v500
    %v831 = vunpack.c.l.b16 %v501
    %v832 = vunpack.c.h.b16 %v501
    %v833 = vunpack.c.l.b16 %v502
    %v834 = vunpack.c.h.b16 %v502
    %v835 = vunpack.c.l.b16 %v503
    %v836 = vunpack.c.l.b16 %v504
    %v837 = vunpack.c.h.b16 %v504
    %v838 = vunpack.c.l.b16 %v505
    %v839 = vunpack.c.h.b16 %v505
    %v840 = vunpack.c.l.b16 %v506
    %v841 = vunpack.c.h.b16 %v506
    %v842 = vunpack.c.l.b16 %v507
    %v843 = vunpack.c.l.b16 %v508
    %v844 = vunpack.c.h.b16 %v508
    %v845 = vunpack.c.l.b16 %v509
    %v846 = vunpack.c.h.b16 %v509
    %v847 = vunpack.c.l.b16 %v510
    %v848 = vunpack.c.h.b16 %v510
    %v849 = vunpack.c.l.b16 %v511
    %v850 = vunpack.c.l.b16 %v512
    %v851 = vunpack.c.h.b16 %v512
    %v852 = vunpack.c.l.b16 %v513
    %v853 = vunpack.c.h.b16 %v513
    %v854 = vunpack.c.l.b16 %v514
    %v855 = vunpack.c.h.b16 %v514
    %v856 = vunpack.c.l.b16 %v515
    %v857 = vunpack.c.l.b16 %v516
    %v858 = vunpack.c.h.b16 %v516
    %v859 = vunpack.c.l.b16 %v517
    %v860 = vunpack.c.h.b16 %v517
    %v861 = vunpack.c.l.b16 %v518
    %v862 = vunpack.c.h.b16 %v518
    %v863 = vunpack.c.l.b16 %v519
    %v864 = vunpack.c.l.b16 %v520
    %v865 = vunpack.c.h.b16 %v520
    %v866 = vunpack.c.l.b16 %v521
    %v867 = vunpack.c.h.b16 %v521
    %v868 = vunpack.c.l.b16 %v522
    %v869 = vunpack.c.h.b16 %v522
    %v870 = vunpack.c.l.b16 %v523
    %v871 = vunpack.c.l.b16 %v524
    %v872 = vunpack.c.h.b16 %v524
    %v873 = vunpack.c.l.b16 %v525
    %v874 = vunpack.c.h.b16 %v525
    %v875 = vunpack.c.l.b16 %v526
    %v876 = vunpack.c.h.b16 %v526
    %v877 = vunpack.c.l.b16 %v527
    %v878 = vunpack.c.l.b16 %v528
    %v879 = vunpack.c.h.b16 %v528
    %v880 = vunpack.c.l.b16 %v529
    %v881 = vunpack.c.h.b16 %v529
    %v882 = vunpack.c.l.b16 %v530
    %v883 = vunpack.c.h.b16 %v530
    %v884 = vunpack.c.l.b16 %v531
    %v885 = vunpack.c.l.b16 %v532
    %v886 = vunpack.c.h.b16 %v532
    %v887 = vunpack.c.l.b16 %v533
    %v888 = vunpack.c.h.b16 %v533
    %v889 = vunpack.c.l.b16 %v534
    %v890 = vunpack.c.h.b16 %v534
    %v891 = vunpack.c.l.b16 %v535
    %v892 = vunpack.c.l.b16 %v536
    %v893 = vunpack.c.h.b16 %v536
    %v894 = vunpack.c.l.b16 %v537
    %v895 = vunpack.c.h.b16 %v537
    %v896 = vunpack.c.l.b16 %v538
    %v897 = vunpack.c.h.b16 %v538
    %v898 = vunpack.c.l.b16 %v539
    %v899 = vunpack.c.l.b16 %v540
    %v900 = vunpack.c.h.b16 %v540
    %v901 = vunpack.c.l.b16 %v541
    %v902 = vunpack.c.h.b16 %v541
    %v903 = vunpack.c.l.b16 %v542
    %v904 = vunpack.c.h.b16 %v542
    %v905 = vunpack.c.l.b16 %v543
    %v906 = vunpack.c.l.b16 %v544
    %v907 = vunpack.c.h.b16 %v544
    %v908 = vunpack.c.l.b16 %v545
    %v909 = vunpack.c.h.b16 %v545
    %v910 = vunpack.c.l.b16 %v546
    %v911 = vunpack.c.h.b16 %v546
    %v912 = vunpack.c.l.b16 %v547
    %v913 = vunpack.c.l.b16 %v548
    %v914 = vunpack.c.h.b16 %v548
    %v915 = vunpack.c.l.b16 %v549
    %v916 = vunpack.c.h.b16 %v549
    %v917 = vunpack.c.l.b16 %v550
    %v918 = vunpack.c.h.b16 %v550
    %v919 = vunpack.c.l.b16 %v551
    %v920 = vunpack.c.l.b16 %v552
    %v921 = vunpack.c.h.b16 %v552
    %v922 = vunpack.c.l.b16 %v553
    %v923 = vunpack.c.h.b16 %v553
    %v924 = vunpack.c.l.b16 %v554
    %v925 = vunpack.c.h.b16 %v554
    %v926 = vunpack.c.l.b16 %v555
    %v927 = vunpack.c.l.b16 %v556
    %v928 = vunpack.c.h.b16 %v556
    %v929 = vunpack.c.l.b16 %v557
    %v930 = vunpack.c.h.b16 %v557
    %v931 = vunpack.c.l.b16 %v558
    %v932 = vunpack.c.h.b16 %v558
    %v933 = vunpack.c.l.b16 %v559
    %v934 = vunpack.c.l.b16 %v560
    %v935 = vunpack.c.h.b16 %v560
    %v936 = vunpack.c.l.b16 %v561
    %v937 = vunpack.c.h.b16 %v561
    %v938 = vunpack.c.l.b16 %v562
    %v939 = vunpack.c.h.b16 %v562
    %v940 = vunpack.c.l.b16 %v563
    %v941 = vunpack.c.l.b16 %v564
    %v942 = vunpack.c.h.b16 %v564
    %v943 = vunpack.c.l.b16 %v565
    %v944 = vunpack.c.h.b16 %v565
    %v945 = vunpack.c.l.b16 %v566
    %v946 = vunpack.c.h.b16 %v566
    %v947 = vunpack.c.l.b16 %v567
    %v948 = vunpack.c.l.b16 %v568
    %v949 = vunpack.c.h.b16 %v568
    %v950 = vunpack.c.l.b16 %v569
    %v951 = vunpack.c.h.b16 %v569
    %v952 = vunpack.c.l.b16 %v570
    %v953 = vunpack.c.h.b16 %v570
    %v954 = vunpack.c.l.b16 %v571
    %v955 = vunpack.c.l.b16 %v572
    %v956 = vunpack.c.h.b16 %v572
    %v957 = vunpack.c.l.b16 %v573
    %v958 = vunpack.c.h.b16 %v573
    %v959 = vunpack.c.l.b16 %v574
    %v960 = vunpack.c.h.b16 %v574
    %v961 = vunpack.c.l.b16 %v575
    %v962 = vunpack.c.l.b16 %v576
    %v963 = vunpack.c.h.b16 %v576
    %v964 = vunpack.c.l.b16 %v577
    %v965 = vunpack.c.h.b16 %v577
    %v966 = vunpack.c.l.b16 %v578
    %v967 = vunpack.c.h.b16 %v578
    %v968 = vunpack.c.l.b16 %v579
    %v969 = vpack.c.b16 %v752, %v745
    %v970 = vpack.c.b16 %v753, %v746
    %v971 = vpack.c.b16 %v754, %v747
    %v972 = vpack.c.b16 %v755, %v748
    %v973 = vpack.c.b16 %v756, %v749
    %v974 = vpack.c.b16 %v757, %v750
    %v975 = vpack.c.b16 %v758, %v751
    %v976 = vpack.c.b16 %v766, %v759
    %v977 = vpack.c.b16 %v767, %v760
    %v978 = vpack.c.b16 %v768, %v761
    %v979 = vpack.c.b16 %v769, %v762
    %v980 = vpack.c.b16 %v770, %v763
    %v981 = vpack.c.b16 %v771, %v764
    %v982 = vpack.c.b16 %v772, %v765
    %v983 = vpack.c.b16 %v780, %v773
    %v984 = vpack.c.b16 %v781, %v774
    %v985 = vpack.c.b16 %v782, %v775
    %v986 = vpack.c.b16 %v783, %v776
    %v987 = vpack.c.b16 %v784, %v777
    %v988 = vpack.c.b16 %v785, %v778
    %v989 = vpack.c.b16 %v786, %v779
    %v990 = vpack.c.b16 %v794, %v787
    %v991 = vpack.c.b16 %v795, %v788
    %v992 = vpack.c.b16 %v796, %v789
    %v993 = vpack.c.b16 %v797, %v790
    %v994 = vpack.c.b16 %v798, %v791
    %v995 = vpack.c.b16 %v799, %v792
    %v996 = vpack.c.b16 %v800, %v793
    %v997 = vpack.c.b16 %v808, %v801
    %v998 = vpack.c.b16 %v809, %v802
    %v999 = vpack.c.b16 %v810, %v803
    %v1000 = vpack.c.b16 %v811, %v804
    %v1001 = vpack.c.b16 %v812, %v805
    %v1002 = vpack.c.b16 %v813, %v806
    %v1003 = vpack.c.b16 %v814, %v807
    %v1004 = vpack.c.b16 %v822, %v815
    %v1005 = vpack.c.b16 %v823, %v816
    %v1006 = vpack.c.b16 %v824, %v817
    %v1007 = vpack.c.b16 %v825, %v818
    %v1008 = vpack.c.b16 %v826, %v819
    %v1009 = vpack.c.b16 %v827, %v820
    %v1010 = vpack.c.b16 %v828, %v821
    %v1011 = vpack.c.b16 %v836, %v829
    %v1012 = vpack.c.b16 %v837, %v830
    %v1013 = vpack.c.b16 %v838, %v831
    %v1014 = vpack.c.b16 %v839, %v832
    %v1015 = vpack.c.b16 %v840, %v833
    %v1016 = vpack.c.b16 %v841, %v834
    %v1017 = vpack.c.b16 %v842, %v835
    %v1018 = vpack.c.b16 %v850, %v843
    %v1019 = vpack.c.b16 %v851, %v844
    %v1020 = vpack.c.b16 %v852, %v845
    %v1021 = vpack.c.b16 %v853, %v846
    %v1022 = vpack.c.b16 %v854, %v847
    %v1023 = vpack.c.b16 %v855, %v848
    %v1024 = vpack.c.b16 %v856, %v849
    %v1025 = vpack.c.b16 %v864, %v857
    %v1026 = vpack.c.b16 %v865, %v858
    %v1027 = vpack.c.b16 %v866, %v859
    %v1028 = vpack.c.b16 %v867, %v860
    %v1029 = vpack.c.b16 %v868, %v861
    %v1030 = vpack.c.b16 %v869, %v862
    %v1031 = vpack.c.b16 %v870, %v863
    %v1032 = vpack.c.b16 %v878, %v871
    %v1033 = vpack.c.b16 %v879, %v872
    %v1034 = vpack.c.b16 %v880, %v873
    %v1035 = vpack.c.b16 %v881, %v874
    %v1036 = vpack.c.b16 %v882, %v875
    %v1037 = vpack.c.b16 %v883, %v876
    %v1038 = vpack.c.b16 %v884, %v877
    %v1039 = vpack.c.b16 %v892, %v885
    %v1040 = vpack.c.b16 %v893, %v886
    %v1041 = vpack.c.b16 %v894, %v887
    %v1042 = vpack.c.b16 %v895, %v888
    %v1043 = vpack.c.b16 %v896, %v889
    %v1044 = vpack.c.b16 %v897, %v890
    %v1045 = vpack.c.b16 %v898, %v891
    %v1046 = vpack.c.b16 %v906, %v899
    %v1047 = vpack.c.b16 %v907, %v900
    %v1048 = vpack.c.b16 %v908, %v901
    %v1049 = vpack.c.b16 %v909, %v902
    %v1050 = vpack.c.b16 %v910, %v903
    %v1051 = vpack.c.b16 %v911, %v904
    %v1052 = vpack.c.b16 %v912, %v905
    %v1053 = vpack.c.b16 %v920, %v913
    %v1054 = vpack.c.b16 %v921, %v914
    %v1055 = vpack.c.b16 %v922, %v915
    %v1056 = vpack.c.b16 %v923, %v916
    %v1057 = vpack.c.b16 %v924, %v917
    %v1058 = vpack.c.b16 %v925, %v918
    %v1059 = vpack.c.b16 %v926, %v919
    %v1060 = vpack.c.b16 %v934, %v927
    %v1061 = vpack.c.b16 %v935, %v928
    %v1062 = vpack.c.b16 %v936, %v929
    %v1063 = vpack.c.b16 %v937, %v930
    %v1064 = vpack.c.b16 %v938, %v931
    %v1065 = vpack.c.b16 %v939, %v932
    %v1066 = vpack.c.b16 %v940, %v933
    %v1067 = vpack.c.b16 %v948, %v941
    %v1068 = vpack.c.b16 %v949, %v942
    %v1069 = vpack.c.b16 %v950, %v943
    %v1070 = vpack.c.b16 %v951, %v944
    %v1071 = vpack.c.b16 %v952, %v945
    %v1072 = vpack.c.b16 %v953, %v946
    %v1073 = vpack.c.b16 %v954, %v947
    %v1074 = vpack.c.b16 %v962, %v955
    %v1075 = vpack.c.b16 %v963, %v956
    %v1076 = vpack.c.b16 %v964, %v957
    %v1077 = vpack.c.b16 %v965, %v958
    %v1078 = vpack.c.b16 %v966, %v959
    %v1079 = vpack.c.b16 %v967, %v960
    %v1080 = vpack.c.b16 %v968, %v961
    %1193 = vmatprep.subr.bf16.mxu0 %v1019
    %1194 = vmatpush1.bf16.msra.mxu0 %v1018
    %1195 = vmatprep.subr.bf16.mxu0 %v1012
    %1196 = vmatpush1.bf16.msra.mxu0 %v1011
    %1197 = vmatprep.subr.bf16.mxu0 %v1005
    %1198 = vmatpush1.bf16.msra.mxu0 %v1004
    %1199 = vmatprep.subr.bf16.mxu0 %v998
    %1200 = vmatpush1.bf16.msra.mxu0 %v997
    %1201 = vmatprep.subr.bf16.mxu0 %v991
    %1202 = vmatpush1.bf16.msra.mxu0 %v990
    %1203 = vmatprep.subr.bf16.mxu0 %v984
    %1204 = vmatpush1.bf16.msra.mxu0 %v983
    %1205 = vmatprep.subr.bf16.mxu0 %v977
    %1206 = vmatpush1.bf16.msra.mxu0 %v976
    %1207 = vmatprep.subr.bf16.mxu0 %v970
    %1208 = vmatpush1.bf16.msra.mxu0 %v969
    %1209 = vmatprep.subr.bf16.mxu0 %v1075
    %1210 = vmatpush2.bf16.msra.mxu0 %v1074
    %1211 = vmatprep.subr.bf16.mxu0 %v1068
    %1212 = vmatpush2.bf16.msra.mxu0 %v1067
    %1213 = vmatprep.subr.bf16.mxu0 %v1061
    %1214 = vmatpush2.bf16.msra.mxu0 %v1060
    %1215 = vmatprep.subr.bf16.mxu0 %v1054
    %1216 = vmatpush2.bf16.msra.mxu0 %v1053
    %1217 = vmatprep.subr.bf16.mxu0 %v1047
    %1218 = vmatpush2.bf16.msra.mxu0 %v1046
    %1219 = vmatprep.subr.bf16.mxu0 %v1040
    %1220 = vmatpush2.bf16.msra.mxu0 %v1039
    %1221 = vmatprep.subr.bf16.mxu0 %v1033
    %1222 = vmatpush2.bf16.msra.mxu0 %v1032
    %1223 = vmatprep.subr.bf16.mxu0 %v1026
    %1224 = vmatpush2.bf16.msra.mxu0 %v1025
    %1225 = vmatprep.mubr.bf16.mxu0 %v451
    %1226 = vmatmul.mubr.bf16.gmra.mxu0 %v450
    %v1227 = vpop.f32.mrf.mxu0
    %v1228 = vadd.f32 %v585, %v1227
    %v1229 = vpop.f32.mrf.mxu0
    %v1230 = vadd.f32 %v589, %v1229
    %v1231 = vpop.f32.mrf.mxu0
    %v1232 = vpop.f32.mrf.mxu0
    %1233 = vdwg.mxu0
    %1234 = vmatprep.subr.bf16.mxu0 %v1021
    %1235 = vmatpush1.bf16.msra.mxu0 %v1020
    %1236 = vmatprep.subr.bf16.mxu0 %v1014
    %1237 = vmatpush1.bf16.msra.mxu0 %v1013
    %1238 = vmatprep.subr.bf16.mxu0 %v1007
    %1239 = vmatpush1.bf16.msra.mxu0 %v1006
    %1240 = vmatprep.subr.bf16.mxu0 %v1000
    %1241 = vmatpush1.bf16.msra.mxu0 %v999
    %1242 = vmatprep.subr.bf16.mxu0 %v993
    %1243 = vmatpush1.bf16.msra.mxu0 %v992
    %1244 = vmatprep.subr.bf16.mxu0 %v986
    %1245 = vmatpush1.bf16.msra.mxu0 %v985
    %1246 = vmatprep.subr.bf16.mxu0 %v979
    %1247 = vmatpush1.bf16.msra.mxu0 %v978
    %1248 = vmatprep.subr.bf16.mxu0 %v972
    %1249 = vmatpush1.bf16.msra.mxu0 %v971
    %1250 = vmatprep.subr.bf16.mxu0 %v1077
    %1251 = vmatpush2.bf16.msra.mxu0 %v1076
    %1252 = vmatprep.subr.bf16.mxu0 %v1070
    %1253 = vmatpush2.bf16.msra.mxu0 %v1069
    %1254 = vmatprep.subr.bf16.mxu0 %v1063
    %1255 = vmatpush2.bf16.msra.mxu0 %v1062
    %1256 = vmatprep.subr.bf16.mxu0 %v1056
    %1257 = vmatpush2.bf16.msra.mxu0 %v1055
    %1258 = vmatprep.subr.bf16.mxu0 %v1049
    %1259 = vmatpush2.bf16.msra.mxu0 %v1048
    %1260 = vmatprep.subr.bf16.mxu0 %v1042
    %1261 = vmatpush2.bf16.msra.mxu0 %v1041
    %1262 = vmatprep.subr.bf16.mxu0 %v1035
    %1263 = vmatpush2.bf16.msra.mxu0 %v1034
    %1264 = vmatprep.subr.bf16.mxu0 %v1028
    %1265 = vmatpush2.bf16.msra.mxu0 %v1027
    %1266 = vmatprep.mubr.bf16.mxu0 %v451
    %1267 = vmatmul.mubr.bf16.gmra.mxu0 %v450
    %v1268 = vpop.f32.mrf.mxu0
    %v1269 = vadd.f32 %v593, %v1268
    %v1270 = vpop.f32.mrf.mxu0
    %v1271 = vadd.f32 %v597, %v1270
    %v1272 = vpop.f32.mrf.mxu0
    %v1273 = vpop.f32.mrf.mxu0
    %1274 = vdwg.mxu0
    %1275 = vmatprep.subr.bf16.mxu0 %v1023
    %1276 = vmatpush1.bf16.msra.mxu0 %v1022
    %1277 = vmatprep.subr.bf16.mxu0 %v1016
    %1278 = vmatpush1.bf16.msra.mxu0 %v1015
    %1279 = vmatprep.subr.bf16.mxu0 %v1009
    %1280 = vmatpush1.bf16.msra.mxu0 %v1008
    %1281 = vmatprep.subr.bf16.mxu0 %v1002
    %1282 = vmatpush1.bf16.msra.mxu0 %v1001
    %1283 = vmatprep.subr.bf16.mxu0 %v995
    %1284 = vmatpush1.bf16.msra.mxu0 %v994
    %1285 = vmatprep.subr.bf16.mxu0 %v988
    %1286 = vmatpush1.bf16.msra.mxu0 %v987
    %1287 = vmatprep.subr.bf16.mxu0 %v981
    %1288 = vmatpush1.bf16.msra.mxu0 %v980
    %1289 = vmatprep.subr.bf16.mxu0 %v974
    %1290 = vmatpush1.bf16.msra.mxu0 %v973
    %1291 = vmatprep.subr.bf16.mxu0 %v1079
    %1292 = vmatpush2.bf16.msra.mxu0 %v1078
    %1293 = vmatprep.subr.bf16.mxu0 %v1072
    %1294 = vmatpush2.bf16.msra.mxu0 %v1071
    %1295 = vmatprep.subr.bf16.mxu0 %v1065
    %1296 = vmatpush2.bf16.msra.mxu0 %v1064
    %1297 = vmatprep.subr.bf16.mxu0 %v1058
    %1298 = vmatpush2.bf16.msra.mxu0 %v1057
    %1299 = vmatprep.subr.bf16.mxu0 %v1051
    %1300 = vmatpush2.bf16.msra.mxu0 %v1050
    %1301 = vmatprep.subr.bf16.mxu0 %v1044
    %1302 = vmatpush2.bf16.msra.mxu0 %v1043
    %1303 = vmatprep.subr.bf16.mxu0 %v1037
    %1304 = vmatpush2.bf16.msra.mxu0 %v1036
    %1305 = vmatprep.subr.bf16.mxu0 %v1030
    %1306 = vmatpush2.bf16.msra.mxu0 %v1029
    %1307 = vmatprep.mubr.bf16.mxu0 %v451
    %1308 = vmatmul.mubr.bf16.gmra.mxu0 %v450
    %v1309 = vpop.f32.mrf.mxu0
    %v1310 = vadd.f32 %v601, %v1309
    %v1311 = vpop.f32.mrf.mxu0
    %v1312 = vadd.f32 %v605, %v1311
    %v1313 = vpop.f32.mrf.mxu0
    %v1314 = vpop.f32.mrf.mxu0
    %1315 = vdwg.mxu0
    %1316 = vmatprep.subr.bf16.mxu0 0
    %1317 = vmatpush1.bf16.msra.mxu0 %v1024
    %1318 = vmatprep.subr.bf16.mxu0 0
    %1319 = vmatpush1.bf16.msra.mxu0 %v1017
    %1320 = vmatprep.subr.bf16.mxu0 0
    %1321 = vmatpush1.bf16.msra.mxu0 %v1010
    %1322 = vmatprep.subr.bf16.mxu0 0
    %1323 = vmatpush1.bf16.msra.mxu0 %v1003
    %1324 = vmatprep.subr.bf16.mxu0 0
    %1325 = vmatpush1.bf16.msra.mxu0 %v996
    %1326 = vmatprep.subr.bf16.mxu0 0
    %1327 = vmatpush1.bf16.msra.mxu0 %v989
    %1328 = vmatprep.subr.bf16.mxu0 0
    %1329 = vmatpush1.bf16.msra.mxu0 %v982
    %1330 = vmatprep.subr.bf16.mxu0 0
    %1331 = vmatpush1.bf16.msra.mxu0 %v975
    %1332 = vmatprep.subr.bf16.mxu0 0
    %1333 = vmatpush2.bf16.msra.mxu0 %v1080
    %1334 = vmatprep.subr.bf16.mxu0 0
    %1335 = vmatpush2.bf16.msra.mxu0 %v1073
    %1336 = vmatprep.subr.bf16.mxu0 0
    %1337 = vmatpush2.bf16.msra.mxu0 %v1066
    %1338 = vmatprep.subr.bf16.mxu0 0
    %1339 = vmatpush2.bf16.msra.mxu0 %v1059
    %1340 = vmatprep.subr.bf16.mxu0 0
    %1341 = vmatpush2.bf16.msra.mxu0 %v1052
    %1342 = vmatprep.subr.bf16.mxu0 0
    %1343 = vmatpush2.bf16.msra.mxu0 %v1045
    %1344 = vmatprep.subr.bf16.mxu0 0
    %1345 = vmatpush2.bf16.msra.mxu0 %v1038
    %1346 = vmatprep.subr.bf16.mxu0 0
    %1347 = vmatpush2.bf16.msra.mxu0 %v1031
    %1348 = vmatprep.mubr.bf16.mxu0 %v451
    %1349 = vmatmul.mubr.bf16.gmra.mxu0 %v450
    %v1350 = vpop.f32.mrf.mxu0
    %v1351 = vadd.f32 %v609, %v1350
    %v1352 = vpop.f32.mrf.mxu0
    %v1353 = vpop.f32.mrf.mxu0
    %v1354 = vpop.f32.mrf.mxu0
    %1355 = vdwg.mxu0
    %v1356 = vtanh.pop %v1228
    %v1357 = vtanh.pop %v1230
    %v1358 = vtanh.pop %v1269
    %v1359 = vtanh.pop %v1271
    %v1360 = vtanh.pop %v1310
    %v1361 = vtanh.pop %v1312
    %v1362 = vtanh.pop %v1351
    %1363 = vst [vmem:[#allocation11] sm:$0xff] %v1356
    %1364 = vst [vmem:[#allocation11 + $0x8] sm:$0xff] %v1357
    %1365 = vst [vmem:[#allocation11 + $0x10] sm:$0xff] %v1358
    %1366 = vst [vmem:[#allocation11 + $0x18] sm:$0xff] %v1359
    %1367 = vst [vmem:[#allocation11 + $0x20] sm:$0xff] %v1360
    %1368 = vst [vmem:[#allocation11 + $0x28] sm:$0xff] %v1361
    %1369 = vst [vmem:[#allocation11 + $0x30] sm:$0xff] %v1362
    // Predicated region
    $region50: #{tpu_custom_call.1} parent=1 // pred_check
      _
    $region51: #{tpu_custom_call.1} parent=1 // pred_check_branch
      %1371 = sbr.rel (0) target = $region53
    $region52: #{tpu_custom_call.1} parent=1 // pred_region
      %s1373 = ssub.s32 896, 896
      %1374 = vsyncadd [#allocation4], %s1373
      %s1376 = sshll.u32 [#allocation11], 4
      %s1377 = int_to_ptr.vmem [resolvable:$true] %s1376
      %1379 = dma.vmem_to_hbm [thread:$0]  %s1377, 896, %s7, [#allocation4]
    $region53: #{tpu_custom_call.1} parent=1 // pred_fallthru
      _
    // Predicated region
    $region54: #{tpu_custom_call.1} parent=1 // pred_check
      _
    $region55: #{tpu_custom_call.1} parent=1 // pred_check_branch
      %1381 = sbr.rel (0) target = $region57
    $region56: #{tpu_custom_call.1} parent=1 // pred_region
      %1382 = dma.done [#allocation4], 896
    $region57: #{tpu_custom_call.1} parent=1 // pred_fallthru
      _
    %1383 = vsyncpa [#allocation3], 1
    %1384 = vsyncpa [#allocation6], 1
    %1385 = vsyncpa [#allocation9], 1
    %1386 = vsyncpa [#allocation4], 1

</llo_original>
